<compile_context>
chip_gen: v6e
topology: v6e:2x2x1
jax: 0.10.0
libtpu: 0.0.40
codegen_flags: <defaults>
</compile_context>

<pallas_src>
import functools

import jax
import jax.numpy as jnp
from jax.experimental import pallas as pl
from jax.experimental.pallas import tpu as pltpu


VMEM_BUDGET_BYTES = 44 * 1024 * 1024   # target working set (fits v7x headroom)
VMEM_LIMIT_BYTES = 48 * 1024 * 1024    # scoped VMEM limit for both passes


# ----------------------------------------------------------------------------
# Pass 1: squeeze (tiled sum over T, VPU-add accumulation) + excite (matmuls)
# ----------------------------------------------------------------------------
def squeeze_excite_kernel(x_ref, w1_ref, b1_ref, w2_ref, b2_ref, s_ref,
                          acc_ref, *, seq_len, t_tile, n_lane_chunks,
                          has_ragged_tail):
    t = pl.program_id(1)          # reduction axis (last grid axis)
    n_t = pl.num_programs(1)

    @pl.when(t == 0)
    def _():
        acc_ref[...] = jnp.zeros_like(acc_ref)

    x = x_ref[...]                                              # (Bt, C, Tt)

    def accumulate(xv):
        # Lane-aligned elementwise adds into the (Bt, C, lanes) scratch:
        # pure VPU work, no per-tile XLU reduce / relayout.
        if n_lane_chunks == 1:
            acc_ref[...] += xv
        else:
            for k in range(n_lane_chunks):
                acc_ref[...] += xv[:, :, k * 128:(k + 1) * 128]

    if has_ragged_tail:
        # Only the last tile pays for the iota/compare/select mask.
        @pl.when(t == n_t - 1)
        def _():
            col = jax.lax.broadcasted_iota(jnp.int32, x.shape, dimension=2)
            valid = (t * t_tile + col) < seq_len
            accumulate(jnp.where(valid, x, jnp.zeros_like(x)))

        @pl.when(t != n_t - 1)
        def _():
            accumulate(x)
    else:
        accumulate(x)

    @pl.when(t == n_t - 1)
    def _():
        # Single lane reduction per (b-block) kernel invocation.
        mean = jnp.sum(acc_ref[...], axis=-1) * (1.0 / seq_len)  # (Bt, C)
        # Conv1d(C -> bneck, k=1) == matmul (M = Bt), then ReLU.
        h = jnp.dot(mean, w1_ref[...],
                    preferred_element_type=jnp.float32) + b1_ref[...]
        h = jnp.maximum(h, 0.0)
        # Conv1d(bneck -> C, k=1) == matmul, then Sigmoid.
        s = jnp.dot(h, w2_ref[...],
                    preferred_element_type=jnp.float32) + b2_ref[...]
        s = jax.nn.sigmoid(s)
        s_ref[...] = s[:, :, None].astype(s_ref.dtype)           # (Bt, C, 1)


# ----------------------------------------------------------------------------
# Pass 2: streaming scale  out = x * s  (broadcast over T)
# ----------------------------------------------------------------------------
def scale_kernel(x_ref, s_ref, o_ref):
    # x_ref: (rows, C, Tt), s_ref: (rows, C, 1) -> broadcast over the lane dim.
    o_ref[...] = x_ref[...] * s_ref[...]


# ----------------------------------------------------------------------------
# Tiling helpers
# ----------------------------------------------------------------------------
def _round_down_128(n):
    return max(128, (n // 128) * 128)


def _pick_t_tile(T, target):
    """Largest multiple-of-128 tile <= target, or full T when T <= 128."""
    if T <= 128:
        return T
    return min(_round_down_128(target), (T // 128) * 128)


def se_module(x, w1, b1, w2, b2, *, t_tile_squeeze=512, t_tile_scale=1024):
    """x: (B, C, T); w1: (C, bneck); b1: (1, bneck); w2: (bneck, C); b2: (1, C)."""
    B, C, T = x.shape
    bneck = w1.shape[1]
    itemsize = x.dtype.itemsize
    acc_itemsize = 4  # f32 accumulator

    # ------------------------- pass 1: squeeze + excite -------------------------
    w_bytes = (w1.size + b1.size + w2.size + b2.size) * w1.dtype.itemsize

    # >= 2 batch blocks when possible so v7x's 2 TensorCores split the squeeze.
    n_b_target = 1 if B == 1 else 2
    bt = -(-B // n_b_target)

    def p1_fixed(bt_):
        # single-buffered weights + accumulator scratch + (double-buffered) s out
        return (w_bytes + bt_ * C * 128 * acc_itemsize + 2 * bt_ * C * itemsize)

    # shrink the batch tile until at least a 128-lane streaming tile fits
    while bt > 1 and p1_fixed(bt) + 2 * bt * C * 128 * itemsize > VMEM_BUDGET_BYTES:
        bt = -(-bt // 2)

    rem = max(0, VMEM_BUDGET_BYTES - p1_fixed(bt))
    max_lanes = max(128, rem // max(1, 2 * bt * C * itemsize))
    tsq = _pick_t_tile(T, min(t_tile_squeeze, max_lanes))
    n_tsq = pl.cdiv(T, tsq)
    n_b = pl.cdiv(B, bt)
    lanes = min(tsq, 128)
    n_lane_chunks = max(1, tsq // 128)
    has_ragged_tail = (T % tsq) != 0

    def resident(shape):
        # constant index map + single-buffered: no pointless double-buffering
        return pl.BlockSpec(shape, lambda b, t: (0,) * len(shape),
                            pipeline_mode=pl.Buffered(1))

    s = pl.pallas_call(
        functools.partial(
            squeeze_excite_kernel,
            seq_len=T, t_tile=tsq, n_lane_chunks=n_lane_chunks,
            has_ragged_tail=has_ragged_tail),
        out_shape=jax.ShapeDtypeStruct((B, C, 1), x.dtype),
        grid_spec=pltpu.PrefetchScalarGridSpec(
            num_scalar_prefetch=0,
            grid=(n_b, n_tsq),
            in_specs=[
                pl.BlockSpec((bt, C, tsq), lambda b, t: (b, 0, t)),  # x tiles
                resident(w1.shape),
                resident(b1.shape),
                resident(w2.shape),
                resident(b2.shape),
            ],
            out_specs=pl.BlockSpec((bt, C, 1), lambda b, t: (b, 0, 0)),
            scratch_shapes=[pltpu.VMEM((bt, C, lanes), jnp.float32)],
        ),
        compiler_params=pltpu.CompilerParams(
            dimension_semantics=("parallel", "arbitrary"),
            vmem_limit_bytes=VMEM_LIMIT_BYTES,
        ),
        cost_estimate=pl.CostEstimate(
            flops=B * C * T + 4 * B * C * bneck,
            transcendentals=B * C,
            bytes_accessed=(B * C * T + 2 * C * bneck + bneck + C + B * C)
            * itemsize,
        ),
    )(x, w1, b1, w2, b2)

    # ----------------------------- pass 2: scale --------------------------------
    # Fold the batch into the block when the working set allows (cuts the number
    # of grid steps by B for a pure streaming multiply); otherwise per-B blocks.
    fold_b = (4 * B * C * 128 * itemsize + 2 * B * C * itemsize
              <= VMEM_BUDGET_BYTES)
    rows = B if fold_b else 1
    rem2 = max(0, VMEM_BUDGET_BYTES - 2 * rows * C * itemsize)
    max_lanes2 = max(128, rem2 // max(1, 4 * rows * C * itemsize))
    tsc = _pick_t_tile(T, min(t_tile_scale, max_lanes2))
    n_tsc = pl.cdiv(T, tsc)

    if fold_b:
        grid = (n_tsc,)
        in_specs = [
            pl.BlockSpec((B, C, tsc), lambda t: (0, 0, t)),
            pl.BlockSpec((B, C, 1), lambda t: (0, 0, 0)),
        ]
        out_specs = pl.BlockSpec((B, C, tsc), lambda t: (0, 0, t))
        semantics = ("parallel",)
    else:
        grid = (B, n_tsc)
        in_specs = [
            pl.BlockSpec((1, C, tsc), lambda b, t: (b, 0, t)),
            pl.BlockSpec((1, C, 1), lambda b, t: (b, 0, 0)),
        ]
        out_specs = pl.BlockSpec((1, C, tsc), lambda b, t: (b, 0, t))
        semantics = ("parallel", "parallel")

    out = pl.pallas_call(
        scale_kernel,
        out_shape=jax.ShapeDtypeStruct((B, C, T), x.dtype),
        grid_spec=pltpu.PrefetchScalarGridSpec(
            num_scalar_prefetch=0,
            grid=grid,
            in_specs=in_specs,
            out_specs=out_specs,
        ),
        compiler_params=pltpu.CompilerParams(
            dimension_semantics=semantics,
            vmem_limit_bytes=VMEM_LIMIT_BYTES,
        ),
        cost_estimate=pl.CostEstimate(
            flops=B * C * T,
            transcendentals=0,
            bytes_accessed=(2 * B * C * T + B * C) * itemsize,
        ),
    )(x, s)
    return out


def se_reference(x, w1, b1, w2, b2):
    """Pure-JAX reference mirroring the PyTorch forward."""
    m = jnp.mean(x, axis=-1)                          # (B, C)
    h = jnp.maximum(m @ w1 + b1, 0.0)                 # (B, bneck)
    s = jax.nn.sigmoid(h @ w2 + b2)                   # (B, C)
    return x * s[:, :, None]


if __name__ == "__main__":
    # Small shapes; T deliberately not a multiple of 128 to exercise the
    # ragged-tail path of both passes.
    B, C, T = 2, 16, 200
    bottleneck = 32

    key = jax.random.PRNGKey(0)
    kx, kw1, kb1, kw2, kb2 = jax.random.split(key, 5)

    x = jax.random.normal(kx, (B, C, T), dtype=jnp.float32)

    # Conv1d k=1 weights stored transposed so the kernel does
    # (B,C)@(C,bneck) and (B,bneck)@(bneck,C) matmuls.
    w1 = jax.random.normal(kw1, (C, bottleneck), dtype=jnp.float32) * 0.1
    b1 = jax.random.normal(kb1, (1, bottleneck), dtype=jnp.float32) * 0.1
    w2 = jax.random.normal(kw2, (bottleneck, C), dtype=jnp.float32) * 0.1
    b2 = jax.random.normal(kb2, (1, C), dtype=jnp.float32) * 0.1

    out = se_module(x, w1, b1, w2, b2)
    out = jax.block_until_ready(out)

    ref = se_reference(x, w1, b1, w2, b2)
    assert out.shape == (B, C, T)
    assert jnp.allclose(out, ref, atol=1e-4, rtol=1e-4), "mismatch vs reference"

    print("KERNEL_OK")
</pallas_src>

<mosaic_0001>
module attributes {stable_mosaic.version = 11 : i64} {
  func.func @squeeze_excite_kernel(%arg0: i32, %arg1: i32, %arg2: memref<1x16x128xf32, #tpu.memory_space<vmem>>, %arg3: memref<16x32xf32, #tpu.memory_space<vmem>>, %arg4: memref<1x32xf32, #tpu.memory_space<vmem>>, %arg5: memref<32x16xf32, #tpu.memory_space<vmem>>, %arg6: memref<1x16xf32, #tpu.memory_space<vmem>>, %arg7: memref<1x16x1xf32, #tpu.memory_space<vmem>>, %arg8: memref<1x16x128xf32, #tpu.memory_space<vmem>>) attributes {dimension_semantics = [#tpu.dimension_semantics<parallel>, #tpu.dimension_semantics<arbitrary>], iteration_bounds = array<i64: 2, 2>, scalar_prefetch = 0 : i64, scratch_operands = 1 : i64, tpu.core_type = #tpu.core_type<tc>, window_params = [{transform_indices = @transform_0, window_bounds = array<i64: 1, 16, 128>}, {pipeline_mode = #tpu.pipeline_mode<synchronous>, transform_indices = @transform_1, window_bounds = array<i64: 16, 32>}, {pipeline_mode = #tpu.pipeline_mode<synchronous>, transform_indices = @transform_2, window_bounds = array<i64: 1, 32>}, {pipeline_mode = #tpu.pipeline_mode<synchronous>, transform_indices = @transform_3, window_bounds = array<i64: 32, 16>}, {pipeline_mode = #tpu.pipeline_mode<synchronous>, transform_indices = @transform_4, window_bounds = array<i64: 1, 16>}, {transform_indices = @transform_5, window_bounds = array<i64: 1, 16, 1>}]} {
    %c0_i32 = arith.constant 0 : i32
    %0 = arith.cmpi eq, %arg1, %c0_i32 : i32
    %1 = arith.extui %0 : i1 to i32
    %c0_i32_0 = arith.constant 0 : i32
    %2 = arith.cmpi ne, %1, %c0_i32_0 : i32
    scf.if %2 {
      %cst = arith.constant 0.000000e+00 : f32
      %13 = vector.broadcast %cst : f32 to vector<1x16x128xf32>
      %c0_8 = arith.constant 0 : index
      %c0_9 = arith.constant 0 : index
      %c0_10 = arith.constant 0 : index
      %14 = vector.load %arg8[%c0_8, %c0_9, %c0_10] : memref<1x16x128xf32, #tpu.memory_space<vmem>>, vector<1x16x128xf32>
      tpu.vector_store %arg8[%c0_8, %c0_9, %c0_10], %13 {strides = array<i32>} : memref<1x16x128xf32, #tpu.memory_space<vmem>>, vector<1x16x128xf32>,
    } else {
    }
    %c0 = arith.constant 0 : index
    %c0_1 = arith.constant 0 : index
    %c0_2 = arith.constant 0 : index
    %3 = vector.load %arg2[%c0, %c0_1, %c0_2] : memref<1x16x128xf32, #tpu.memory_space<vmem>>, vector<1x16x128xf32>
    %c1_i32 = arith.constant 1 : i32
    %4 = arith.cmpi eq, %arg1, %c1_i32 : i32
    %5 = arith.extui %4 : i1 to i32
    %c0_i32_3 = arith.constant 0 : i32
    %6 = arith.cmpi ne, %5, %c0_i32_3 : i32
    scf.if %6 {
      %13 = tpu.iota {dimensions = array<i32: 2>} : vector<1x16x128xi32>
      %c128_i32 = arith.constant 128 : i32
      %14 = arith.muli %arg1, %c128_i32 : i32
      %15 = vector.broadcast %14 : i32 to vector<1x16x128xi32>
      %16 = arith.addi %15, %13 : vector<1x16x128xi32>
      %c200_i32 = arith.constant 200 : i32
      %17 = vector.broadcast %c200_i32 : i32 to vector<1x16x128xi32>
      %18 = arith.cmpi slt, %16, %17 : vector<1x16x128xi32>
      %cst = arith.constant 0.000000e+00 : f32
      %19 = vector.broadcast %cst : f32 to vector<1x16x128xf32>
      %20 = arith.select %18, %3, %19 : vector<1x16x128xi1>, vector<1x16x128xf32>
      %c0_8 = arith.constant 0 : index
      %c0_9 = arith.constant 0 : index
      %c0_10 = arith.constant 0 : index
      %21 = vector.load %arg8[%c0_8, %c0_9, %c0_10] : memref<1x16x128xf32, #tpu.memory_space<vmem>>, vector<1x16x128xf32>
      %22 = arith.addf %21, %20 : vector<1x16x128xf32>
      %c0_11 = arith.constant 0 : index
      %c0_12 = arith.constant 0 : index
      %c0_13 = arith.constant 0 : index
      %23 = vector.load %arg8[%c0_11, %c0_12, %c0_13] : memref<1x16x128xf32, #tpu.memory_space<vmem>>, vector<1x16x128xf32>
      tpu.vector_store %arg8[%c0_11, %c0_12, %c0_13], %22 {strides = array<i32>} : memref<1x16x128xf32, #tpu.memory_space<vmem>>, vector<1x16x128xf32>,
    } else {
    }
    %c1_i32_4 = arith.constant 1 : i32
    %7 = arith.cmpi ne, %arg1, %c1_i32_4 : i32
    %8 = arith.extui %7 : i1 to i32
    %c0_i32_5 = arith.constant 0 : i32
    %9 = arith.cmpi ne, %8, %c0_i32_5 : i32
    scf.if %9 {
      %c0_8 = arith.constant 0 : index
      %c0_9 = arith.constant 0 : index
      %c0_10 = arith.constant 0 : index
      %13 = vector.load %arg8[%c0_8, %c0_9, %c0_10] : memref<1x16x128xf32, #tpu.memory_space<vmem>>, vector<1x16x128xf32>
      %14 = arith.addf %13, %3 : vector<1x16x128xf32>
      %c0_11 = arith.constant 0 : index
      %c0_12 = arith.constant 0 : index
      %c0_13 = arith.constant 0 : index
      %15 = vector.load %arg8[%c0_11, %c0_12, %c0_13] : memref<1x16x128xf32, #tpu.memory_space<vmem>>, vector<1x16x128xf32>
      tpu.vector_store %arg8[%c0_11, %c0_12, %c0_13], %14 {strides = array<i32>} : memref<1x16x128xf32, #tpu.memory_space<vmem>>, vector<1x16x128xf32>,
    } else {
    }
    %c1_i32_6 = arith.constant 1 : i32
    %10 = arith.cmpi eq, %arg1, %c1_i32_6 : i32
    %11 = arith.extui %10 : i1 to i32
    %c0_i32_7 = arith.constant 0 : i32
    %12 = arith.cmpi ne, %11, %c0_i32_7 : i32
    scf.if %12 {
      %c0_8 = arith.constant 0 : index
      %c0_9 = arith.constant 0 : index
      %c0_10 = arith.constant 0 : index
      %13 = vector.load %arg8[%c0_8, %c0_9, %c0_10] : memref<1x16x128xf32, #tpu.memory_space<vmem>>, vector<1x16x128xf32>
      %cst = arith.constant dense<0.000000e+00> : vector<1x16xf32>
      %14 = vector.multi_reduction <add>, %13, %cst [2] : vector<1x16x128xf32> to vector<1x16xf32>
      %cst_11 = arith.constant 5.000000e-03 : f32
      %15 = vector.broadcast %cst_11 : f32 to vector<1x16xf32>
      %16 = arith.mulf %14, %15 : vector<1x16xf32>
      %c0_12 = arith.constant 0 : index
      %c0_13 = arith.constant 0 : index
      %17 = vector.load %arg3[%c0_12, %c0_13] : memref<16x32xf32, #tpu.memory_space<vmem>>, vector<16x32xf32>
      %cst_14 = arith.constant dense<0.000000e+00> : vector<1x32xf32>
      %18 = tpu.matmul %16, %17, %cst_14 {dimension_numbers = #tpu.dot_dimension_numbers<[1], [0], [0], [1], [0, 0, 1, 1], [], []>} : vector<1x16xf32>, vector<16x32xf32>, vector<1x32xf32> -> vector<1x32xf32>
      %c0_15 = arith.constant 0 : index
      %c0_16 = arith.constant 0 : index
      %19 = vector.load %arg4[%c0_15, %c0_16] : memref<1x32xf32, #tpu.memory_space<vmem>>, vector<1x32xf32>
      %20 = arith.addf %18, %19 : vector<1x32xf32>
      %cst_17 = arith.constant 0.000000e+00 : f32
      %21 = vector.broadcast %cst_17 : f32 to vector<1x32xf32>
      %22 = arith.maximumf %20, %21 : vector<1x32xf32>
      %c0_18 = arith.constant 0 : index
      %c0_19 = arith.constant 0 : index
      %23 = vector.load %arg5[%c0_18, %c0_19] : memref<32x16xf32, #tpu.memory_space<vmem>>, vector<32x16xf32>
      %cst_20 = arith.constant dense<0.000000e+00> : vector<1x16xf32>
      %24 = tpu.matmul %22, %23, %cst_20 {dimension_numbers = #tpu.dot_dimension_numbers<[1], [0], [0], [1], [0, 0, 1, 1], [], []>} : vector<1x32xf32>, vector<32x16xf32>, vector<1x16xf32> -> vector<1x16xf32>
      %c0_21 = arith.constant 0 : index
      %c0_22 = arith.constant 0 : index
      %25 = vector.load %arg6[%c0_21, %c0_22] : memref<1x16xf32, #tpu.memory_space<vmem>>, vector<1x16xf32>
      %26 = arith.addf %24, %25 : vector<1x16xf32>
      %27 = arith.negf %26 : vector<1x16xf32>
      %28 = math.exp %27 : vector<1x16xf32>
      %cst_23 = arith.constant 1.000000e+00 : f32
      %29 = vector.broadcast %cst_23 : f32 to vector<1x16xf32>
      %30 = arith.addf %29, %28 : vector<1x16xf32>
      %31 = arith.divf %29, %30 : vector<1x16xf32>
      %32 = vector.shape_cast %31 : vector<1x16xf32> to vector<1x16x1xf32>
      %c0_24 = arith.constant 0 : index
      %c0_25 = arith.constant 0 : index
      %c0_26 = arith.constant 0 : index
      %33 = vector.load %arg7[%c0_24, %c0_25, %c0_26] : memref<1x16x1xf32, #tpu.memory_space<vmem>>, vector<1x16x1xf32>
      tpu.vector_store %arg7[%c0_24, %c0_25, %c0_26], %32 {strides = array<i32>} : memref<1x16x1xf32, #tpu.memory_space<vmem>>, vector<1x16x1xf32>,
    } else {
    }
    return
  }
  func.func @transform_0(%arg0: i32, %arg1: i32) -> (i32, i32, i32) {
    %c0_i32 = arith.constant 0 : i32
    %c0_i32_0 = arith.constant 0 : i32
    return %arg0, %c0_i32, %arg1 : i32, i32, i32
  }
  func.func @transform_1(%arg0: i32, %arg1: i32) -> (i32, i32) {
    %c0_i32 = arith.constant 0 : i32
    %c0_i32_0 = arith.constant 0 : i32
    %c0_i32_1 = arith.constant 0 : i32
    return %c0_i32, %c0_i32_0 : i32, i32
  }
  func.func @transform_2(%arg0: i32, %arg1: i32) -> (i32, i32) {
    %c0_i32 = arith.constant 0 : i32
    %c0_i32_0 = arith.constant 0 : i32
    %c0_i32_1 = arith.constant 0 : i32
    return %c0_i32, %c0_i32_0 : i32, i32
  }
  func.func @transform_3(%arg0: i32, %arg1: i32) -> (i32, i32) {
    %c0_i32 = arith.constant 0 : i32
    %c0_i32_0 = arith.constant 0 : i32
    %c0_i32_1 = arith.constant 0 : i32
    return %c0_i32, %c0_i32_0 : i32, i32
  }
  func.func @transform_4(%arg0: i32, %arg1: i32) -> (i32, i32) {
    %c0_i32 = arith.constant 0 : i32
    %c0_i32_0 = arith.constant 0 : i32
    %c0_i32_1 = arith.constant 0 : i32
    return %c0_i32, %c0_i32_0 : i32, i32
  }
  func.func @transform_5(%arg0: i32, %arg1: i32) -> (i32, i32, i32) {
    %c0_i32 = arith.constant 0 : i32
    %c0_i32_0 = arith.constant 0 : i32
    %c0_i32_1 = arith.constant 0 : i32
    return %arg0, %c0_i32, %c0_i32_0 : i32, i32, i32
  }
}

</mosaic_0001>

<llo_original>
// kernel: tpu_custom_call.1
$region0: #{tpu_custom_call.1}
  #allocation0 [shape = 'u32[]', space=smem, size = 0x4, offset = 0x4, fixed_abs, tag = 'smem constant byte address 0x4 - core index']
  #allocation1 [shape = 'u32[144,128]{1,0:T(1,128)}', space=vmem, size = 0x12000, scoped, tag = 'internal scratch']
  #allocation2 [shape = 'f32[1,16,128]{2,1,0:T(8,128)}', space=vmem, size = 0x2000, scoped, tag = 'scratch operand']
  %s0 = inlined_call_operand.hbm [shape: f32[2,16,200], index: 0, kind: input, shape index: {}]
  %s1 = inlined_call_operand.vmem [shape: f32[16,32], index: 1, kind: input, shape index: {}]
  %s2 = inlined_call_operand.vmem [shape: f32[1,32], index: 2, kind: input, shape index: {}]
  %s3 = inlined_call_operand.vmem [shape: f32[32,16], index: 3, kind: input, shape index: {}]
  %s4 = inlined_call_operand.vmem [shape: f32[1,16], index: 4, kind: input, shape index: {}]
  %s5 = inlined_call_operand.vmem [shape: f32[2,16,1], index: 5, kind: output, shape index: {}]
  %s6 = sld [smem:[#allocation0]]
  $region73: #{tpu_custom_call.1} parent=0
    _
  %s8 = ssub.s32 1, %s6
  %s9 = scalar_select 0, %s8, %s6
  $region1: #{tpu_custom_call.1} parent=0
    #allocation3 [shape = 'u8[16384]{0}', space=vmem, size = 0x4000, scoped, tag = 'input window, operand 0']
    #allocation4 [shape = 's32[2]{0}', space=sflag, size = 0x8, scoped, tag = 'scoped memory for tpu_custom_call.1']
    %10 = vsyncpa [#allocation4], 0
    %s11 = scalar_lea.sflag [#allocation4], 1
    %12 = vsyncpa %s11, 0
    loop: start=0, step=1, limit=6
    $region2: #{tpu_custom_call.1} parent=1 // loop_pre_header
      _
    $region3: #{tpu_custom_call.1} parent=1 // loop_header
      %s14 = sphi 0, %s18
      %p15 = scmp.ge.s32.totalorder %s14, 6
      %s21 = sphi 0, %s33
      %s22 = sphi 0, %s29
      %s23 = sphi 0, %s21
      %s24 = sphi 0, %s22
      %s25 = sphi 0, %s23
      %s26 = sphi 0, %s24
      %s38 = sphi 0, %s40
      %s41 = sphi 0, %s38
      %s42 = sphi 0, %s41
      %s58 = sphi 0, %s42
      %s62 = sphi 0, %s62
      %s64 = sphi 0, %s62
      %s65 = sphi 0, %s64
      %s79 = sphi 0, %s65
      %s83 = sphi 0, %s83
      %s85 = sphi 0, %s83
      %s86 = sphi 0, %s85
      %s100 = sphi 0, %s86
      %s104 = sphi 0, %s104
      %s106 = sphi 0, %s104
      %s107 = sphi 0, %s106
      %s121 = sphi 0, %s107
      %s125 = sphi 0, %s125
      %s127 = sphi 0, %s125
      %s128 = sphi 0, %s127
      %s142 = sphi 0, %s128
      %s148 = sphi 0, %s150
      %s151 = sphi 0, %s148
      %s152 = sphi 0, %s151
      %s168 = sphi 0, %s152
    $region4: #{tpu_custom_call.1} parent=1 // loop_header_branch
      %17 = sbr.rel (%p15) target = $region8
    $region5: #{tpu_custom_call.1} parent=1 // loop_body
      %s19 = ssub.s32 %s14, 1
      %s20 = ssub.s32 %s14, 2
      %s27 = sadd.s32 1, %s22
      %p28 = scmp.ge.s32.totalorder %s27, 2
      %s29 = scalar_select %p28, 0, %s27
      %s30 = sadd.s32 1, %s21
      %s31 = scalar_select %p28, %s30, %s21
      %p32 = scmp.ge.s32.totalorder %s31, 2
      %s33 = scalar_select %p32, 0, %s31
      %s34 = ssub.s32 %s21, %s33
      %s35 = ssub.s32 %s22, %s29
      %s36 = sor.u32 %s34, %s35
      %p37 = scmp.eq.s32.totalorder %s36, 0
      %s39 = sadd.s32 %s38, 1
      %s40 = scalar_select %p37, %s38, %s39
      %p43 = pneg %p37
      %p44 = scmp.eq.s32.totalorder %s14, 3
      %p45 = por %p43, %p44
      %p46 = scmp.ne.s32.totalorder %s38, %s41
      %p47 = scmp.eq.s32.totalorder %s14, 0
      %p48 = por %p46, %p47
      %p49 = scmp.ne.s32.totalorder %s38, %s41
      %p50 = scmp.eq.s32.totalorder %s19, 3
      %p51 = por %p49, %p50
      %p52 = scmp.ne.s32.totalorder %s41, %s42
      %p53 = scmp.eq.s32.totalorder %s19, 0
      %p54 = por %p52, %p53
      %p55 = scmp.ne.s32.totalorder %s41, %s42
      %p56 = scmp.eq.s32.totalorder %s20, 3
      %p57 = por %p55, %p56
      %p59 = scmp.ne.s32.totalorder %s42, %s58
      %p60 = scmp.eq.s32.totalorder %s20, 0
      %p61 = por %p59, %p60
      %s63 = sadd.s32 %s62, 1
      %p66 = scmp.eq.s32.totalorder %s14, 3
      %p67 = scmp.ne.s32.totalorder %s62, %s64
      %p68 = scmp.eq.s32.totalorder %s14, 0
      %p69 = por %p67, %p68
      %p70 = scmp.ne.s32.totalorder %s62, %s64
      %p71 = scmp.eq.s32.totalorder %s19, 3
      %p72 = por %p70, %p71
      %p73 = scmp.ne.s32.totalorder %s64, %s65
      %p74 = scmp.eq.s32.totalorder %s19, 0
      %p75 = por %p73, %p74
      %p76 = scmp.ne.s32.totalorder %s64, %s65
      %p77 = scmp.eq.s32.totalorder %s20, 3
      %p78 = por %p76, %p77
      %p80 = scmp.ne.s32.totalorder %s65, %s79
      %p81 = scmp.eq.s32.totalorder %s20, 0
      %p82 = por %p80, %p81
      %s84 = sadd.s32 %s83, 1
      %p87 = scmp.eq.s32.totalorder %s14, 3
      %p88 = scmp.ne.s32.totalorder %s83, %s85
      %p89 = scmp.eq.s32.totalorder %s14, 0
      %p90 = por %p88, %p89
      %p91 = scmp.ne.s32.totalorder %s83, %s85
      %p92 = scmp.eq.s32.totalorder %s19, 3
      %p93 = por %p91, %p92
      %p94 = scmp.ne.s32.totalorder %s85, %s86
      %p95 = scmp.eq.s32.totalorder %s19, 0
      %p96 = por %p94, %p95
      %p97 = scmp.ne.s32.totalorder %s85, %s86
      %p98 = scmp.eq.s32.totalorder %s20, 3
      %p99 = por %p97, %p98
      %p101 = scmp.ne.s32.totalorder %s86, %s100
      %p102 = scmp.eq.s32.totalorder %s20, 0
      %p103 = por %p101, %p102
      %s105 = sadd.s32 %s104, 1
      %p108 = scmp.eq.s32.totalorder %s14, 3
      %p109 = scmp.ne.s32.totalorder %s104, %s106
      %p110 = scmp.eq.s32.totalorder %s14, 0
      %p111 = por %p109, %p110
      %p112 = scmp.ne.s32.totalorder %s104, %s106
      %p113 = scmp.eq.s32.totalorder %s19, 3
      %p114 = por %p112, %p113
      %p115 = scmp.ne.s32.totalorder %s106, %s107
      %p116 = scmp.eq.s32.totalorder %s19, 0
      %p117 = por %p115, %p116
      %p118 = scmp.ne.s32.totalorder %s106, %s107
      %p119 = scmp.eq.s32.totalorder %s20, 3
      %p120 = por %p118, %p119
      %p122 = scmp.ne.s32.totalorder %s107, %s121
      %p123 = scmp.eq.s32.totalorder %s20, 0
      %p124 = por %p122, %p123
      %s126 = sadd.s32 %s125, 1
      %p129 = scmp.eq.s32.totalorder %s14, 3
      %p130 = scmp.ne.s32.totalorder %s125, %s127
      %p131 = scmp.eq.s32.totalorder %s14, 0
      %p132 = por %p130, %p131
      %p133 = scmp.ne.s32.totalorder %s125, %s127
      %p134 = scmp.eq.s32.totalorder %s19, 3
      %p135 = por %p133, %p134
      %p136 = scmp.ne.s32.totalorder %s127, %s128
      %p137 = scmp.eq.s32.totalorder %s19, 0
      %p138 = por %p136, %p137
      %p139 = scmp.ne.s32.totalorder %s127, %s128
      %p140 = scmp.eq.s32.totalorder %s20, 3
      %p141 = por %p139, %p140
      %p143 = scmp.ne.s32.totalorder %s128, %s142
      %p144 = scmp.eq.s32.totalorder %s20, 0
      %p145 = por %p143, %p144
      %s146 = ssub.s32 %s21, %s33
      %p147 = scmp.eq.s32.totalorder %s146, 0
      %s149 = sadd.s32 %s148, 1
      %s150 = scalar_select %p147, %s148, %s149
      %p153 = pneg %p147
      %p154 = scmp.eq.s32.totalorder %s14, 3
      %p155 = por %p153, %p154
      %p156 = scmp.ne.s32.totalorder %s148, %s151
      %p157 = scmp.eq.s32.totalorder %s14, 0
      %p158 = por %p156, %p157
      %p159 = scmp.ne.s32.totalorder %s148, %s151
      %p160 = scmp.eq.s32.totalorder %s19, 3
      %p161 = por %p159, %p160
      %p162 = scmp.ne.s32.totalorder %s151, %s152
      %p163 = scmp.eq.s32.totalorder %s19, 0
      %p164 = por %p162, %p163
      %p165 = scmp.ne.s32.totalorder %s151, %s152
      %p166 = scmp.eq.s32.totalorder %s20, 3
      %p167 = por %p165, %p166
      %p169 = scmp.ne.s32.totalorder %s152, %s168
      %p170 = scmp.eq.s32.totalorder %s20, 0
      %p171 = por %p169, %p170
      %p172 = scmp.le.s32.totalorder 1, %s14
      %p173 = scmp.lt.s32.totalorder %s14, 5
      %p174 = pnand %p172, %p173
      %p175 = pneg %p174
      // Predicated region
      $region9: #{tpu_custom_call.1} parent=5 // pred_check
        _
      $region10: #{tpu_custom_call.1} parent=5 // pred_check_branch
        %177 = sbr.rel (%p174) target = $region12
      $region11: #{tpu_custom_call.1} parent=5 // pred_region
        %s178 = ssub.s32 %s14, 1
        // Predicated region
        $region13: #{tpu_custom_call.1} parent=11 // pred_check
          %p179 = pneg %p75
        $region14: #{tpu_custom_call.1} parent=11 // pred_check_branch
          %181 = sbr.rel (%p179) target = $region16
        $region15: #{tpu_custom_call.1} parent=11 // pred_region
          _
        $region16: #{tpu_custom_call.1} parent=11 // pred_fallthru
          _
        // Predicated region
        $region17: #{tpu_custom_call.1} parent=11 // pred_check
          %p182 = pneg %p96
        $region18: #{tpu_custom_call.1} parent=11 // pred_check_branch
          %184 = sbr.rel (%p182) target = $region20
        $region19: #{tpu_custom_call.1} parent=11 // pred_region
          _
        $region20: #{tpu_custom_call.1} parent=11 // pred_fallthru
          _
        // Predicated region
        $region21: #{tpu_custom_call.1} parent=11 // pred_check
          %p185 = pneg %p117
        $region22: #{tpu_custom_call.1} parent=11 // pred_check_branch
          %187 = sbr.rel (%p185) target = $region24
        $region23: #{tpu_custom_call.1} parent=11 // pred_region
          _
        $region24: #{tpu_custom_call.1} parent=11 // pred_fallthru
          _
        // Predicated region
        $region25: #{tpu_custom_call.1} parent=11 // pred_check
          %p188 = pneg %p138
        $region26: #{tpu_custom_call.1} parent=11 // pred_check_branch
          %190 = sbr.rel (%p188) target = $region28
        $region27: #{tpu_custom_call.1} parent=11 // pred_region
          _
        $region28: #{tpu_custom_call.1} parent=11 // pred_fallthru
          _
      $region12: #{tpu_custom_call.1} parent=5 // pred_fallthru
        _
      %p191 = scmp.lt.s32.totalorder %s14, 4
      // Predicated region
      $region29: #{tpu_custom_call.1} parent=5 // pred_check
        %p192 = pneg %p191
      $region30: #{tpu_custom_call.1} parent=5 // pred_check_branch
        %194 = sbr.rel (%p192) target = $region32
      $region31: #{tpu_custom_call.1} parent=5 // pred_region
        // Predicated region
        $region33: #{tpu_custom_call.1} parent=31 // pred_check
          %p195 = pneg %p48
        $region34: #{tpu_custom_call.1} parent=31 // pred_check_branch
          %197 = sbr.rel (%p195) target = $region36
        $region35: #{tpu_custom_call.1} parent=31 // pred_region
          %s198 = sand.u32 %s38, 1
          %s199 = scalar_lea.sflag [#allocation4], %s198
          %s200 = sand.u32 %s38, 1
          %s201 = smul.addr %s200, 16
          %s202 = scalar_lea.vmem [#allocation3], %s201
          %s204 = ssub.s32 256, 256
          %205 = vsyncadd %s199, %s204
          %s206 = smul.addr %s21, 4
          %s207 = sadd.s32 %s22, %s206
          %s208 = smul.addr %s207, 128
          %s209 = scalar_lea.hbm %s0, %s208
          %s210 = sshll.u32 %s202, 4
          %s211 = int_to_ptr.vmem [resolvable:$true] %s210
          %216 = dma.hbm_to_vmem [thread:$0]  %s209, 256, %s211, %s199, 256, 128, 8
        $region36: #{tpu_custom_call.1} parent=31 // pred_fallthru
          _
      $region32: #{tpu_custom_call.1} parent=5 // pred_fallthru
        _
      %p217 = scmp.le.s32.totalorder 1, %s14
      %p218 = scmp.lt.s32.totalorder %s14, 5
      %p219 = pnand %p217, %p218
      %p220 = pneg %p219
      // Predicated region
      $region37: #{tpu_custom_call.1} parent=5 // pred_check
        _
      $region38: #{tpu_custom_call.1} parent=5 // pred_check_branch
        %222 = sbr.rel (%p219) target = $region40
      $region39: #{tpu_custom_call.1} parent=5 // pred_region
        %s223 = ssub.s32 %s14, 1
        %s224 = sand.u32 %s41, 1
        %s225 = scalar_lea.sflag [#allocation4], %s224
        %s226 = sand.u32 %s41, 1
        %s227 = smul.addr %s226, 16
        %s228 = scalar_lea.vmem [#allocation3], %s227
        // Predicated region
        $region41: #{tpu_custom_call.1} parent=39 // pred_check
          %p229 = pneg %p54
        $region42: #{tpu_custom_call.1} parent=39 // pred_check_branch
          %231 = sbr.rel (%p229) target = $region44
        $region43: #{tpu_custom_call.1} parent=39 // pred_region
          %232 = dma.done %s225, 256
        $region44: #{tpu_custom_call.1} parent=39 // pred_fallthru
          _
        %s233 = sand.u32 %s41, 1
        %s234 = scalar_lea.sflag [#allocation4], %s233
        %s235 = sand.u32 %s41, 1
        %s236 = smul.addr %s235, 16
        %s237 = scalar_lea.vmem [#allocation3], %s236
        %p238 = pneg %p54
        %p239 = pneg %p51
        %p240 = pneg %p75
        %p241 = pneg %p72
        %p242 = pneg %p96
        %p243 = pneg %p93
        %p244 = pneg %p117
        %p245 = pneg %p114
        %p246 = pneg %p138
        %p247 = pneg %p135
        %p248 = pneg %p164
        %p249 = pneg %p161
        %p250 = scmp.lt.s32.totalorder %s23, 1
        %s251 = scalar_select %p250, %s23, 1
        %s252 = smul.addr %s251, 2
        %s253 = smul.addr %s252, 8
        %s254 = scalar_lea.vmem %s5, %s253
        %p255 = scmp.lt.s32.totalorder %s23, 1
        %s256 = scalar_select %p255, %s23, 1
        %s257 = smul.addr %s256, 2
        %s258 = smul.addr %s257, 8
        %s259 = scalar_lea.vmem %s5, %s258
        %p260 = scmp.eq.s32.totalorder %s24, 0
        // Predicated region
        $region45: #{tpu_custom_call.1} parent=39 // pred_check
          %p261 = pneg %p260
        $region46: #{tpu_custom_call.1} parent=39 // pred_check_branch
          %263 = sbr.rel (%p261) target = $region48
        $region47: #{tpu_custom_call.1} parent=39 // pred_region
          %264 = vst [vmem:[#allocation2] sm:$0xff] 0.0
          %265 = vst [vmem:[#allocation2 + $0x8] sm:$0xff] 0.0
        $region48: #{tpu_custom_call.1} parent=39 // pred_fallthru
          _
        %v266 = vld [vmem:[%s228] sm:$0xff]
        %v267 = vld [vmem:[%s228 + $0x8] sm:$0xff]
        %p268 = scmp.eq.s32.totalorder %s24, 1
        // Predicated region
        $region49: #{tpu_custom_call.1} parent=39 // pred_check
          %p269 = pneg %p268
        $region50: #{tpu_custom_call.1} parent=39 // pred_check_branch
          %271 = sbr.rel (%p269) target = $region52
        $region51: #{tpu_custom_call.1} parent=39 // pred_region
          %v272 = vlaneseq
          %v273 = vand.u32 %v272, 127
          %s274 = smul.u32 %s24, 128
          %v275 = vstv %s274
          %v276 = vadd.s32 %v275, %v273
          %vm277 = vcmp.lt.s32.totalorder %v276, 200
          %v278 = vsel %vm277, %v266, 0.0
          %v279 = vsel %vm277, %v267, 0.0
          %v280 = vld [vmem:[#allocation2] sm:$0xff]
          %v281 = vld [vmem:[#allocation2 + $0x8] sm:$0xff]
          %v282 = vadd.f32 %v280, %v278
          %v283 = vadd.f32 %v281, %v279
          %284 = vst [vmem:[#allocation2] sm:$0xff] %v282
          %285 = vst [vmem:[#allocation2 + $0x8] sm:$0xff] %v283
        $region52: #{tpu_custom_call.1} parent=39 // pred_fallthru
          _
        %p286 = scmp.ne.s32.totalorder %s24, 1
        // Predicated region
        $region53: #{tpu_custom_call.1} parent=39 // pred_check
          %p287 = pneg %p286
        $region54: #{tpu_custom_call.1} parent=39 // pred_check_branch
          %289 = sbr.rel (%p287) target = $region56
        $region55: #{tpu_custom_call.1} parent=39 // pred_region
          %v290 = vld [vmem:[#allocation2] sm:$0xff]
          %v291 = vld [vmem:[#allocation2 + $0x8] sm:$0xff]
          %v292 = vadd.f32 %v290, %v266
          %v293 = vadd.f32 %v291, %v267
          %294 = vst [vmem:[#allocation2] sm:$0xff] %v292
          %295 = vst [vmem:[#allocation2 + $0x8] sm:$0xff] %v293
        $region56: #{tpu_custom_call.1} parent=39 // pred_fallthru
          _
        // Predicated region
        $region57: #{tpu_custom_call.1} parent=39 // pred_check
          %p296 = pneg %p268
        $region58: #{tpu_custom_call.1} parent=39 // pred_check_branch
          %298 = sbr.rel (%p296) target = $region60
        $region59: #{tpu_custom_call.1} parent=39 // pred_region
          %v299 = vld [vmem:[#allocation2] sm:$0xff]
          %v300 = vld [vmem:[#allocation2 + $0x8] sm:$0xff]
          %301 = vadd.xlane.f32.xlu0 %v299
          %v302 = vpop.xlane.xlu0 %301
          %303 = vadd.xlane.f32.xlu0 %v300
          %v304 = vpop.xlane.xlu0 %303
          %v305 = vmul.f32 %v302, 0.005
          %v306 = vmul.f32 %v304, 0.005
          %v307 = vld [vmem:[%s1] sm:$0xff]
          %v308 = vld [vmem:[%s1 + $0x8] sm:$0xff]
          %v309 = vld [vmem:[%s2] sm:$0x1]
          %v312 = vlaneseq
          %v313 = vand.u32 %v312, 127
          %v314 = vlaneseq
          %v315 = vshrl.u32 %v314, 7
          %v316 = vsub.s32 %v313, %v315
          %v317 = vrot.slane %v305, %v316
          %v318 = vadd.s32 %v313, 4294967288
          %v319 = vlaneseq
          %v320 = vshrl.u32 %v319, 7
          %v321 = vsub.s32 %v318, %v320
          %v322 = vrot.slane %v306, %v321
          %vm323 = vcmask 130112
          %v324 = vsel %vm323, %v322, %v317
          %vm325 = vcmask 130048
          %v326 = vsel %vm325, %v324, 0
          %328 = vmatprep.subr.mxu0 0.0
          %329 = vmatpush1.msra.mxu0 0.0
          %330 = vmatprep.subr.mxu0 0.0
          %331 = vmatpush1.msra.mxu0 0.0
          %332 = vmatprep.subr.mxu0 0.0
          %333 = vmatpush1.msra.mxu0 0.0
          %334 = vmatprep.subr.mxu0 0.0
          %335 = vmatpush1.msra.mxu0 0.0
          %336 = vmatprep.subr.mxu0 0.0
          %337 = vmatpush1.msra.mxu0 0.0
          %338 = vmatprep.subr.mxu0 0.0
          %339 = vmatpush1.msra.mxu0 0.0
          %340 = vmatprep.subr.mxu0 0.0
          %341 = vmatpush1.msra.mxu0 0.0
          %342 = vmatprep.subr.mxu0 0.0
          %343 = vmatpush1.msra.mxu0 0.0
          %344 = vmatprep.subr.mxu0 0.0
          %345 = vmatpush1.msra.mxu0 0.0
          %346 = vmatprep.subr.mxu0 0.0
          %347 = vmatpush1.msra.mxu0 0.0
          %348 = vmatprep.subr.mxu0 0.0
          %349 = vmatpush1.msra.mxu0 0.0
          %350 = vmatprep.subr.mxu0 0.0
          %351 = vmatpush1.msra.mxu0 0.0
          %352 = vmatprep.subr.mxu0 0.0
          %353 = vmatpush1.msra.mxu0 0.0
          %354 = vmatprep.subr.mxu0 0.0
          %355 = vmatpush1.msra.mxu0 0.0
          %356 = vmatprep.subr.mxu0 0.0
          %357 = vmatpush1.msra.mxu0 %v308
          %358 = vmatprep.subr.mxu0 0.0
          %359 = vmatpush1.msra.mxu0 %v307
          %360 = vmatprep.subr.mxu0 0.0
          %361 = vmatpush2.msra.mxu0 0.0
          %362 = vmatprep.subr.mxu0 0.0
          %363 = vmatpush2.msra.mxu0 0.0
          %364 = vmatprep.subr.mxu0 0.0
          %365 = vmatpush2.msra.mxu0 0.0
          %366 = vmatprep.subr.mxu0 0.0
          %367 = vmatpush2.msra.mxu0 0.0
          %368 = vmatprep.subr.mxu0 0.0
          %369 = vmatpush2.msra.mxu0 0.0
          %370 = vmatprep.subr.mxu0 0.0
          %371 = vmatpush2.msra.mxu0 0.0
          %372 = vmatprep.subr.mxu0 0.0
          %373 = vmatpush2.msra.mxu0 0.0
          %374 = vmatprep.subr.mxu0 0.0
          %375 = vmatpush2.msra.mxu0 0.0
          %376 = vmatprep.subr.mxu0 0.0
          %377 = vmatpush2.msra.mxu0 0.0
          %378 = vmatprep.subr.mxu0 0.0
          %379 = vmatpush2.msra.mxu0 0.0
          %380 = vmatprep.subr.mxu0 0.0
          %381 = vmatpush2.msra.mxu0 0.0
          %382 = vmatprep.subr.mxu0 0.0
          %383 = vmatpush2.msra.mxu0 0.0
          %384 = vmatprep.subr.mxu0 0.0
          %385 = vmatpush2.msra.mxu0 0.0
          %386 = vmatprep.subr.mxu0 0.0
          %387 = vmatpush2.msra.mxu0 0.0
          %388 = vmatprep.subr.mxu0 0.0
          %389 = vmatpush2.msra.mxu0 0.0
          %390 = vmatprep.subr.mxu0 0.0
          %391 = vmatpush2.msra.mxu0 0.0
          %392 = vmatprep.mubr.f32.mxu0 0.0
          %393 = vmatmul.mubr.f32.gmra.mxu0 %v326
          %v394 = vpop.f32.mrf.mxu0
          %v395 = vadd.f32 %v309, %v394
          %v396 = vpop.f32.mrf.mxu0
          %397 = vdwg.mxu0
          %v398 = vmax.f32 %v395, 0.0
          %v399 = vld [vmem:[%s3] sm:$0xff]
          %v400 = vld [vmem:[%s3 + $0x8] sm:$0xff]
          %v401 = vld [vmem:[%s3 + $0x10] sm:$0xff]
          %v402 = vld [vmem:[%s3 + $0x18] sm:$0xff]
          %v403 = vld [vmem:[%s4] sm:$0x1]
          %vm404 = vcmask 261120
          %v406 = vsel %vm404, %v398, 0
          %408 = vmatprep.subr.mxu0 0.0
          %409 = vmatpush1.msra.mxu0 0.0
          %410 = vmatprep.subr.mxu0 0.0
          %411 = vmatpush1.msra.mxu0 0.0
          %412 = vmatprep.subr.mxu0 0.0
          %413 = vmatpush1.msra.mxu0 0.0
          %414 = vmatprep.subr.mxu0 0.0
          %415 = vmatpush1.msra.mxu0 0.0
          %416 = vmatprep.subr.mxu0 0.0
          %417 = vmatpush1.msra.mxu0 0.0
          %418 = vmatprep.subr.mxu0 0.0
          %419 = vmatpush1.msra.mxu0 0.0
          %420 = vmatprep.subr.mxu0 0.0
          %421 = vmatpush1.msra.mxu0 0.0
          %422 = vmatprep.subr.mxu0 0.0
          %423 = vmatpush1.msra.mxu0 0.0
          %424 = vmatprep.subr.mxu0 0.0
          %425 = vmatpush1.msra.mxu0 0.0
          %426 = vmatprep.subr.mxu0 0.0
          %427 = vmatpush1.msra.mxu0 0.0
          %428 = vmatprep.subr.mxu0 0.0
          %429 = vmatpush1.msra.mxu0 0.0
          %430 = vmatprep.subr.mxu0 0.0
          %431 = vmatpush1.msra.mxu0 0.0
          %432 = vmatprep.subr.mxu0 0.0
          %433 = vmatpush1.msra.mxu0 %v402
          %434 = vmatprep.subr.mxu0 0.0
          %435 = vmatpush1.msra.mxu0 %v401
          %436 = vmatprep.subr.mxu0 0.0
          %437 = vmatpush1.msra.mxu0 %v400
          %438 = vmatprep.subr.mxu0 0.0
          %439 = vmatpush1.msra.mxu0 %v399
          %440 = vmatprep.subr.mxu0 0.0
          %441 = vmatpush2.msra.mxu0 0.0
          %442 = vmatprep.subr.mxu0 0.0
          %443 = vmatpush2.msra.mxu0 0.0
          %444 = vmatprep.subr.mxu0 0.0
          %445 = vmatpush2.msra.mxu0 0.0
          %446 = vmatprep.subr.mxu0 0.0
          %447 = vmatpush2.msra.mxu0 0.0
          %448 = vmatprep.subr.mxu0 0.0
          %449 = vmatpush2.msra.mxu0 0.0
          %450 = vmatprep.subr.mxu0 0.0
          %451 = vmatpush2.msra.mxu0 0.0
          %452 = vmatprep.subr.mxu0 0.0
          %453 = vmatpush2.msra.mxu0 0.0
          %454 = vmatprep.subr.mxu0 0.0
          %455 = vmatpush2.msra.mxu0 0.0
          %456 = vmatprep.subr.mxu0 0.0
          %457 = vmatpush2.msra.mxu0 0.0
          %458 = vmatprep.subr.mxu0 0.0
          %459 = vmatpush2.msra.mxu0 0.0
          %460 = vmatprep.subr.mxu0 0.0
          %461 = vmatpush2.msra.mxu0 0.0
          %462 = vmatprep.subr.mxu0 0.0
          %463 = vmatpush2.msra.mxu0 0.0
          %464 = vmatprep.subr.mxu0 0.0
          %465 = vmatpush2.msra.mxu0 0.0
          %466 = vmatprep.subr.mxu0 0.0
          %467 = vmatpush2.msra.mxu0 0.0
          %468 = vmatprep.subr.mxu0 0.0
          %469 = vmatpush2.msra.mxu0 0.0
          %470 = vmatprep.subr.mxu0 0.0
          %471 = vmatpush2.msra.mxu0 0.0
          %472 = vmatprep.mubr.f32.mxu0 0.0
          %473 = vmatmul.mubr.f32.gmra.mxu0 %v406
          %v474 = vpop.f32.mrf.mxu0
          %v475 = vadd.f32 %v403, %v474
          %v476 = vpop.f32.mrf.mxu0
          %477 = vdwg.mxu0
          %v478 = vxor.u32 %v475, 2147483648
          %v479 = vmul.f32 %v478, 1.442695
          %v480 = vpow.pop %v479
          %v481 = vadd.f32 %v480, 1.0
          %v482 = vrcp.pop %v481
          %v483 = vmul.f32 1.0, %v482
          %v484 = vlaneseq
          %v485 = vshrl.u32 %v484, 7
          %v486 = vsub.s32 0, %v485
          %v487 = vrot.slane %v483, %v486
          %489 = vbcast.lane.b32.xlu0 %v487, 256
          %v490 = vpop.permute.xlu0 %489
          %s492 = sor.u32 256, 8
          %493 = vbcast.lane.b32.xlu0 %v487, %s492
          %v494 = vpop.permute.xlu0 %493
          %vm495 = vcmask 7168
          %496 = vst.msk [vmem:[%s259] sm:$0xff] %vm495, %v490
          %497 = vst.msk [vmem:[%s259 + $0x8] sm:$0xff] %vm495, %v494
        $region60: #{tpu_custom_call.1} parent=39 // pred_fallthru
          _
        %p498 = scmp.lt.s32.totalorder %s23, 1
        %s499 = scalar_select %p498, %s23, 1
        %s500 = smul.addr %s499, 2
        %s501 = smul.addr %s500, 8
        %s502 = scalar_lea.vmem %s5, %s501
        // Predicated region
        $region61: #{tpu_custom_call.1} parent=39 // pred_check
          %p503 = pneg %p161
        $region62: #{tpu_custom_call.1} parent=39 // pred_check_branch
          %505 = sbr.rel (%p503) target = $region64
        $region63: #{tpu_custom_call.1} parent=39 // pred_region
          _
        $region64: #{tpu_custom_call.1} parent=39 // pred_fallthru
          _
      $region40: #{tpu_custom_call.1} parent=5 // pred_fallthru
        _
      %p506 = scmp.le.s32.totalorder 2, %s14
      // Predicated region
      $region65: #{tpu_custom_call.1} parent=5 // pred_check
        %p507 = pneg %p506
      $region66: #{tpu_custom_call.1} parent=5 // pred_check_branch
        %509 = sbr.rel (%p507) target = $region68
      $region67: #{tpu_custom_call.1} parent=5 // pred_region
        %s510 = ssub.s32 %s14, 2
        // Predicated region
        $region69: #{tpu_custom_call.1} parent=67 // pred_check
          %p511 = pneg %p167
        $region70: #{tpu_custom_call.1} parent=67 // pred_check_branch
          %513 = sbr.rel (%p511) target = $region72
        $region71: #{tpu_custom_call.1} parent=67 // pred_region
          %p514 = scmp.lt.s32.totalorder %s25, 1
          %s515 = scalar_select %p514, %s25, 1
          %s516 = smul.addr %s515, 2
          %s517 = smul.addr %s516, 8
          %s518 = scalar_lea.vmem %s5, %s517
        $region72: #{tpu_custom_call.1} parent=67 // pred_fallthru
          _
      $region68: #{tpu_custom_call.1} parent=5 // pred_fallthru
        _
    $region6: #{tpu_custom_call.1} parent=1 // loop_footer
      %s18 = sadd.s32 1, %s14
    $region7: #{tpu_custom_call.1} parent=1 // loop_footer_branch
      %13 = sbr.rel target = $region3
    $region8: #{tpu_custom_call.1} parent=1 // loop_exit
      _
    %519 = vsyncpa [#allocation4], 1
    %s520 = scalar_lea.sflag [#allocation4], 1
    %521 = vsyncpa %s520, 1

</llo_original>
